<compile_context>
chip_gen: v5e
topology: v5e:2x2
jax: 0.10.0
libtpu: 0.0.40
codegen_flags: <defaults>
</compile_context>

<pallas_src>
import jax
import jax.numpy as jnp
from jax import lax
from jax.experimental import pallas as pl
from jax.experimental.pallas import tpu as pltpu

LANE = 128   # vreg lane width
SUB = 8      # f32 sublanes per vreg
GROUP = 32   # rows per inner step (4 f32 vregs; also the int8 sublane-pack granule)


def _round_up(a, b):
    return -(-a // b) * b


def _num_tensorcores():
    """Best-effort TensorCore count for the megacore chunk split (v7x: 2)."""
    try:
        info = pltpu.get_tpu_info()
    except Exception:
        return 1
    for name in ("num_cores", "core_count", "num_tensorcores", "tensor_core_count"):
        v = getattr(info, name, None)
        if v is None:
            continue
        try:
            v = int(v)
        except (TypeError, ValueError):
            continue
        if v >= 1:
            return min(v, 2)
    return 1


def _accumulate_block(x_ref, t_ref, tile, row_limit):
    """One fused pass over a (tile, 128) block.

    Returns four (8, 128) f32 partials: pos_count, neg_count, pos_bce, neg_bce.
    All intermediates stay in vregs (loop-carried); nothing is written back to
    VMEM between mask / BCE / fold.  `row_limit` (traced scalar) masks trailing
    garbage rows of a boundary block; None means the whole block is valid.
    """
    groups = tile // GROUP

    def body(g, carry):
        ap, an, bp, bn = carry
        r0 = pl.multiple_of(g * GROUP, GROUP)
        x = x_ref[pl.ds(r0, GROUP), :].astype(jnp.float32)
        t = t_ref[pl.ds(r0, GROUP), :].astype(jnp.float32)

        pos = t == 1.0
        neg = t == 0.0
        if row_limit is not None:
            row = r0 + lax.broadcasted_iota(jnp.int32, (GROUP, LANE), 0)
            valid = row < row_limit
            pos = jnp.logical_and(pos, valid)
            neg = jnp.logical_and(neg, valid)

        # Numerically stable BCE-with-logits.  Garbage rows (if any) are removed
        # with selects below, so NaN/Inf there cannot leak into the sums.
        bce = jnp.maximum(x, 0.0) - x * t + jnp.log1p(jnp.exp(-jnp.abs(x)))

        def fold(v):
            # (GROUP,128) -> (8,128): vreg-aligned adds only (VPU, no XLU).
            return v.reshape(GROUP // SUB, SUB, LANE).sum(axis=0)

        return (ap + fold(jnp.where(pos, 1.0, 0.0)),
                an + fold(jnp.where(neg, 1.0, 0.0)),
                bp + fold(jnp.where(pos, bce, 0.0)),
                bn + fold(jnp.where(neg, bce, 0.0)))

    z = jnp.zeros((SUB, LANE), jnp.float32)
    return lax.fori_loop(0, groups, body, (z, z, z, z),
                         unroll=2 if groups > 1 else 1)


def _make_kernel(tile, tiles_per_chunk, valid_rows, grid_rows):
    exact = (grid_rows == valid_rows)   # every block fully in-bounds -> no masking code

    def kernel(x_ref, t_ref, out_ref):
        i = pl.program_id(1)

        @pl.when(i == 0)
        def _init():
            out_ref[...] = jnp.zeros_like(out_ref)

        def add_out(parts):
            out_ref[0, 0] += parts[0]
            out_ref[0, 1] += parts[1]
            out_ref[0, 2] += parts[2]
            out_ref[0, 3] += parts[3]

        if exact:
            add_out(_accumulate_block(x_ref, t_ref, tile, None))
        else:
            c = pl.program_id(0)
            rem = valid_rows - (c * tiles_per_chunk + i) * tile   # valid rows left

            @pl.when(rem >= tile)                     # interior block: no mask cost
            def _full():
                add_out(_accumulate_block(x_ref, t_ref, tile, None))

            @pl.when(jnp.logical_and(rem > 0, rem < tile))   # ragged boundary block
            def _partial():
                add_out(_accumulate_block(x_ref, t_ref, tile, rem))
            # rem <= 0: block lies entirely past the data -> contributes nothing.

    return kernel


def balanced_loss(logits, target, neg_weight=1.0, tile_rows=4096):
    """Pallas BalancedLoss forward.  logits/target: any shape, equal element count.

    For best HBM throughput pass logits as bf16 and target as int8 (labels in
    {-1, 0, 1}); the f32 cast happens on the VMEM tile inside the kernel.
    """
    x_flat = logits.reshape(-1)
    t_flat = target.reshape(-1)
    n = x_flat.shape[0]

    rows = -(-n // LANE)
    if n % LANE != 0 or rows < GROUP:
        # A pad copy is unavoidable here (a lane-dense (rows,128) view needs a
        # multiple of 128 elements) or the array is tiny; fold the row padding
        # into the same single pad so all blocks are GROUP-aligned.
        rows = _round_up(rows, GROUP)
        pad = rows * LANE - n
        x_flat = jnp.pad(x_flat, (0, pad))                         # logits -> 0
        t_flat = jnp.pad(t_flat, (0, pad), constant_values=-1)     # ignore label
    # else: zero-copy path -- the reshape below is free; ragged tile rows are
    # masked inside the kernel instead of being padded in HBM.

    x2 = x_flat.reshape(rows, LANE)
    t2 = t_flat.reshape(rows, LANE)

    tile_cap = max(GROUP, (int(tile_rows) // GROUP) * GROUP)
    tile = min(tile_cap, (rows // GROUP) * GROUP)     # multiple of GROUP, <= rows
    num_tiles = -(-rows // tile)
    num_chunks = max(1, min(_num_tensorcores(), num_tiles))
    tiles_per_chunk = -(-num_tiles // num_chunks)
    grid_rows = num_chunks * tiles_per_chunk * tile

    def in_map(c, i):
        # Clamp so a (rare) overrun block just re-reads the last tile; its
        # contribution is skipped in the kernel (rem <= 0).
        return (jnp.minimum(c * tiles_per_chunk + i, num_tiles - 1), 0)

    partials = pl.pallas_call(
        _make_kernel(tile, tiles_per_chunk, rows, grid_rows),
        out_shape=jax.ShapeDtypeStruct((num_chunks, 4, SUB, LANE), jnp.float32),
        grid=(num_chunks, tiles_per_chunk),
        in_specs=[
            pl.BlockSpec((tile, LANE), in_map),
            pl.BlockSpec((tile, LANE), in_map),
        ],
        out_specs=pl.BlockSpec((1, 4, SUB, LANE), lambda c, i: (c, 0, 0, 0)),
        compiler_params=pltpu.CompilerParams(
            dimension_semantics=("parallel", "arbitrary")),
    )(x2, t2)

    # Tiny final combine in plain JAX.
    sums = jnp.sum(partials, axis=(0, 2, 3))
    pos_num, neg_num, pos_bce, neg_bce = sums[0], sums[1], sums[2], sums[3]
    has_pos = pos_num > 0
    has_neg = neg_num > 0
    pos_term = jnp.where(has_pos, pos_bce / jnp.where(has_pos, pos_num, 1.0), 0.0)
    neg_term = jnp.where(
        has_neg, float(neg_weight) * neg_bce / jnp.where(has_neg, neg_num, 1.0), 0.0)
    w_sum = jnp.where(has_pos, 1.0, 0.0) + jnp.where(has_neg, float(neg_weight), 0.0)
    # Note: all labels == ignore (-1) gives w_sum == 0 -> NaN, matching the
    # PyTorch reference's behaviour in that degenerate case.
    return (pos_term + neg_term) / w_sum


def balanced_loss_ref(logits, target, neg_weight=1.0):
    """Pure-JAX reference mirroring the PyTorch module."""
    x = logits.astype(jnp.float32)
    t = target.astype(jnp.float32)
    pos = t == 1.0
    neg = t == 0.0
    pos_num = jnp.sum(pos.astype(jnp.float32))
    neg_num = jnp.sum(neg.astype(jnp.float32))
    weight = jnp.zeros_like(t)
    weight = jnp.where(pos, 1.0 / pos_num, weight)
    weight = jnp.where(neg, (1.0 / neg_num) * neg_weight, weight)
    weight = weight / jnp.sum(weight)
    bce = jnp.maximum(x, 0.0) - x * t + jnp.log1p(jnp.exp(-jnp.abs(x)))
    return jnp.sum(weight * bce)


if __name__ == "__main__":
    key = jax.random.PRNGKey(0)
    k1, k2, k3, k4, k5, k6 = jax.random.split(key, 6)

    # Case 1: small SiamRPN-like cls map (NCHW), lane-aligned element count.
    B, C, H, W = 2, 4, 16, 16
    logits = jax.random.normal(k1, (B, C, H, W), dtype=jnp.float32)
    u = jax.random.uniform(k2, (B, C, H, W))
    # labels: ~25% positive (1), ~65% negative (0), ~10% ignored (-1, weight 0)
    target = jnp.where(u < 0.25, 1.0, jnp.where(u < 0.90, 0.0, -1.0)).astype(jnp.float32)
    loss = jax.block_until_ready(balanced_loss(logits, target, neg_weight=1.0))
    ref = balanced_loss_ref(logits, target, neg_weight=1.0)
    assert jnp.allclose(loss, ref, rtol=1e-4, atol=1e-5), (loss, ref)

    # Case 2: odd 25x25 spatial size -> minimal lane padding path, non-unit neg_weight.
    logits2 = jax.random.normal(k3, (1, 10, 25, 25), dtype=jnp.float32)
    u2 = jax.random.uniform(k4, (1, 10, 25, 25))
    target2 = jnp.where(u2 < 0.2, 1.0, jnp.where(u2 < 0.85, 0.0, -1.0)).astype(jnp.float32)
    loss2 = jax.block_until_ready(balanced_loss(logits2, target2, neg_weight=0.5))
    ref2 = balanced_loss_ref(logits2, target2, neg_weight=0.5)
    assert jnp.allclose(loss2, ref2, rtol=1e-4, atol=1e-5), (loss2, ref2)

    # Case 3: no positive labels at all -> guarded finalize must stay finite.
    target3 = jnp.where(u2 < 0.85, 0.0, -1.0).astype(jnp.float32)
    loss3 = jax.block_until_ready(balanced_loss(logits2, target3, neg_weight=1.0))
    ref3 = balanced_loss_ref(logits2, target3, neg_weight=1.0)
    assert jnp.isfinite(loss3), loss3
    assert jnp.allclose(loss3, ref3, rtol=1e-4, atol=1e-5), (loss3, ref3)

    # Case 4: zero-copy path with narrow dtypes (bf16 logits, int8 targets) and a
    # forced multi-tile grid whose last block is ragged (in-kernel masking).
    logits4 = jax.random.normal(k5, (2, 3, 32, 128), dtype=jnp.bfloat16)
    u4 = jax.random.uniform(k6, (2, 3, 32, 128))
    target4 = jnp.where(u4 < 0.3, 1, jnp.where(u4 < 0.9, 0, -1)).astype(jnp.int8)
    loss4 = jax.block_until_ready(
        balanced_loss(logits4, target4, neg_weight=0.7, tile_rows=128))
    ref4 = balanced_loss_ref(logits4, target4, neg_weight=0.7)
    assert jnp.allclose(loss4, ref4, rtol=1e-4, atol=1e-5), (loss4, ref4)

    # Case 5: f32 zero-copy path with a ragged last tile (48 of 64 rows valid).
    logits5 = jax.random.normal(k1, (3, 80, 128), dtype=jnp.float32)
    u5 = jax.random.uniform(k2, (3, 80, 128))
    target5 = jnp.where(u5 < 0.25, 1.0, jnp.where(u5 < 0.9, 0.0, -1.0)).astype(jnp.float32)
    loss5 = jax.block_until_ready(
        balanced_loss(logits5, target5, neg_weight=1.3, tile_rows=64))
    ref5 = balanced_loss_ref(logits5, target5, neg_weight=1.3)
    assert jnp.allclose(loss5, ref5, rtol=1e-4, atol=1e-5), (loss5, ref5)

    print("KERNEL_OK")
</pallas_src>

<mosaic_0001>
module attributes {stable_mosaic.version = 11 : i64} {
  func.func @kernel(%arg0: i32, %arg1: i32, %arg2: memref<32x128xf32, #tpu.memory_space<vmem>>, %arg3: memref<32x128xf32, #tpu.memory_space<vmem>>, %arg4: memref<1x4x8x128xf32, #tpu.memory_space<vmem>>) attributes {dimension_semantics = [#tpu.dimension_semantics<parallel>, #tpu.dimension_semantics<arbitrary>], iteration_bounds = array<i64: 1, 1>, scalar_prefetch = 0 : i64, scratch_operands = 0 : i64, tpu.core_type = #tpu.core_type<tc>, window_params = [{transform_indices = @transform_0, window_bounds = array<i64: 32, 128>}, {transform_indices = @transform_1, window_bounds = array<i64: 32, 128>}, {transform_indices = @transform_2, window_bounds = array<i64: 1, 4, 8, 128>}]} {
    %c0_i32 = arith.constant 0 : i32
    %0 = arith.cmpi eq, %arg1, %c0_i32 : i32
    %1 = arith.extui %0 : i1 to i32
    %c0_i32_0 = arith.constant 0 : i32
    %2 = arith.cmpi ne, %1, %c0_i32_0 : i32
    scf.if %2 {
      %cst_46 = arith.constant 0.000000e+00 : f32
      %70 = vector.broadcast %cst_46 : f32 to vector<1x4x8x128xf32>
      %c0_47 = arith.constant 0 : index
      %c0_48 = arith.constant 0 : index
      %c0_49 = arith.constant 0 : index
      %c0_50 = arith.constant 0 : index
      %71 = vector.load %arg4[%c0_47, %c0_48, %c0_49, %c0_50] : memref<1x4x8x128xf32, #tpu.memory_space<vmem>>, vector<1x4x8x128xf32>
      tpu.vector_store %arg4[%c0_47, %c0_48, %c0_49, %c0_50], %70 {strides = array<i32>} : memref<1x4x8x128xf32, #tpu.memory_space<vmem>>, vector<1x4x8x128xf32>,
    } else {
    }
    %cst = arith.constant 0.000000e+00 : f32
    %3 = vector.broadcast %cst : f32 to vector<8x128xf32>
    %c0_i32_1 = arith.constant 0 : i32
    %c32_i32 = arith.constant 32 : i32
    %4 = arith.muli %c0_i32_1, %c32_i32 : i32
    %5 = tpu.assume_multiple %4, 32 : i32
    %6 = arith.index_cast %5 : i32 to index
    %c0 = arith.constant 0 : index
    %7 = vector.load %arg2[%6, %c0] : memref<32x128xf32, #tpu.memory_space<vmem>>, vector<32x128xf32>
    %8 = arith.index_cast %5 : i32 to index
    %c0_2 = arith.constant 0 : index
    %9 = vector.load %arg3[%8, %c0_2] : memref<32x128xf32, #tpu.memory_space<vmem>>, vector<32x128xf32>
    %cst_3 = arith.constant 1.000000e+00 : f32
    %10 = vector.broadcast %cst_3 : f32 to vector<32x128xf32>
    %11 = arith.cmpf oeq, %9, %10 : vector<32x128xf32>
    %cst_4 = arith.constant 0.000000e+00 : f32
    %12 = vector.broadcast %cst_4 : f32 to vector<32x128xf32>
    %13 = arith.cmpf oeq, %9, %12 : vector<32x128xf32>
    %cst_5 = arith.constant 0.000000e+00 : f32
    %14 = vector.broadcast %cst_5 : f32 to vector<32x128xf32>
    %15 = arith.maximumf %7, %14 : vector<32x128xf32>
    %16 = arith.mulf %7, %9 : vector<32x128xf32>
    %17 = arith.subf %15, %16 : vector<32x128xf32>
    %18 = math.absf %7 : vector<32x128xf32>
    %cst_6 = arith.constant 0.000000e+00 : f32
    %19 = vector.broadcast %cst_6 : f32 to vector<32x128xf32>
    %20 = arith.subf %19, %18 : vector<32x128xf32>
    %21 = math.exp %20 : vector<32x128xf32>
    %22 = math.log1p %21 : vector<32x128xf32>
    %23 = arith.addf %17, %22 : vector<32x128xf32>
    %cst_7 = arith.constant 1.000000e+00 : f32
    %cst_8 = arith.constant 0.000000e+00 : f32
    %24 = vector.broadcast %cst_7 : f32 to vector<32x128xf32>
    %25 = vector.broadcast %cst_8 : f32 to vector<32x128xf32>
    %26 = arith.select %11, %24, %25 : vector<32x128xi1>, vector<32x128xf32>
    %27 = vector.shape_cast %26 : vector<32x128xf32> to vector<4x8x128xf32>
    %cst_9 = arith.constant dense<0.000000e+00> : vector<8x128xf32>
    %28 = vector.multi_reduction <add>, %27, %cst_9 [0] : vector<4x8x128xf32> to vector<8x128xf32>
    %29 = arith.addf %3, %28 : vector<8x128xf32>
    %cst_10 = arith.constant 1.000000e+00 : f32
    %cst_11 = arith.constant 0.000000e+00 : f32
    %30 = vector.broadcast %cst_10 : f32 to vector<32x128xf32>
    %31 = vector.broadcast %cst_11 : f32 to vector<32x128xf32>
    %32 = arith.select %13, %30, %31 : vector<32x128xi1>, vector<32x128xf32>
    %33 = vector.shape_cast %32 : vector<32x128xf32> to vector<4x8x128xf32>
    %cst_12 = arith.constant dense<0.000000e+00> : vector<8x128xf32>
    %34 = vector.multi_reduction <add>, %33, %cst_12 [0] : vector<4x8x128xf32> to vector<8x128xf32>
    %35 = arith.addf %3, %34 : vector<8x128xf32>
    %cst_13 = arith.constant 0.000000e+00 : f32
    %36 = vector.broadcast %cst_13 : f32 to vector<32x128xf32>
    %37 = arith.select %11, %23, %36 : vector<32x128xi1>, vector<32x128xf32>
    %38 = vector.shape_cast %37 : vector<32x128xf32> to vector<4x8x128xf32>
    %cst_14 = arith.constant dense<0.000000e+00> : vector<8x128xf32>
    %39 = vector.multi_reduction <add>, %38, %cst_14 [0] : vector<4x8x128xf32> to vector<8x128xf32>
    %40 = arith.addf %3, %39 : vector<8x128xf32>
    %cst_15 = arith.constant 0.000000e+00 : f32
    %41 = vector.broadcast %cst_15 : f32 to vector<32x128xf32>
    %42 = arith.select %13, %23, %41 : vector<32x128xi1>, vector<32x128xf32>
    %43 = vector.shape_cast %42 : vector<32x128xf32> to vector<4x8x128xf32>
    %cst_16 = arith.constant dense<0.000000e+00> : vector<8x128xf32>
    %44 = vector.multi_reduction <add>, %43, %cst_16 [0] : vector<4x8x128xf32> to vector<8x128xf32>
    %45 = arith.addf %3, %44 : vector<8x128xf32>
    %c1_i32 = arith.constant 1 : i32
    %c0_17 = arith.constant 0 : index
    %c0_18 = arith.constant 0 : index
    %c0_19 = arith.constant 0 : index
    %c0_20 = arith.constant 0 : index
    %46 = vector.load %arg4[%c0_17, %c0_18, %c0_19, %c0_20] : memref<1x4x8x128xf32, #tpu.memory_space<vmem>>, vector<1x1x8x128xf32>
    %47 = vector.shape_cast %46 : vector<1x1x8x128xf32> to vector<8x128xf32>
    %48 = arith.addf %47, %29 : vector<8x128xf32>
    %c0_21 = arith.constant 0 : index
    %c0_22 = arith.constant 0 : index
    %c0_23 = arith.constant 0 : index
    %c0_24 = arith.constant 0 : index
    %49 = vector.load %arg4[%c0_21, %c0_22, %c0_23, %c0_24] : memref<1x4x8x128xf32, #tpu.memory_space<vmem>>, vector<1x1x8x128xf32>
    %50 = vector.shape_cast %49 : vector<1x1x8x128xf32> to vector<8x128xf32>
    %51 = vector.shape_cast %48 : vector<8x128xf32> to vector<1x1x8x128xf32>
    tpu.vector_store %arg4[%c0_21, %c0_22, %c0_23, %c0_24], %51 {strides = array<i32>} : memref<1x4x8x128xf32, #tpu.memory_space<vmem>>, vector<1x1x8x128xf32>,
    %c0_25 = arith.constant 0 : index
    %c1 = arith.constant 1 : index
    %c0_26 = arith.constant 0 : index
    %c0_27 = arith.constant 0 : index
    %52 = vector.load %arg4[%c0_25, %c1, %c0_26, %c0_27] : memref<1x4x8x128xf32, #tpu.memory_space<vmem>>, vector<1x1x8x128xf32>
    %53 = vector.shape_cast %52 : vector<1x1x8x128xf32> to vector<8x128xf32>
    %54 = arith.addf %53, %35 : vector<8x128xf32>
    %c0_28 = arith.constant 0 : index
    %c1_29 = arith.constant 1 : index
    %c0_30 = arith.constant 0 : index
    %c0_31 = arith.constant 0 : index
    %55 = vector.load %arg4[%c0_28, %c1_29, %c0_30, %c0_31] : memref<1x4x8x128xf32, #tpu.memory_space<vmem>>, vector<1x1x8x128xf32>
    %56 = vector.shape_cast %55 : vector<1x1x8x128xf32> to vector<8x128xf32>
    %57 = vector.shape_cast %54 : vector<8x128xf32> to vector<1x1x8x128xf32>
    tpu.vector_store %arg4[%c0_28, %c1_29, %c0_30, %c0_31], %57 {strides = array<i32>} : memref<1x4x8x128xf32, #tpu.memory_space<vmem>>, vector<1x1x8x128xf32>,
    %c0_32 = arith.constant 0 : index
    %c2 = arith.constant 2 : index
    %c0_33 = arith.constant 0 : index
    %c0_34 = arith.constant 0 : index
    %58 = vector.load %arg4[%c0_32, %c2, %c0_33, %c0_34] : memref<1x4x8x128xf32, #tpu.memory_space<vmem>>, vector<1x1x8x128xf32>
    %59 = vector.shape_cast %58 : vector<1x1x8x128xf32> to vector<8x128xf32>
    %60 = arith.addf %59, %40 : vector<8x128xf32>
    %c0_35 = arith.constant 0 : index
    %c2_36 = arith.constant 2 : index
    %c0_37 = arith.constant 0 : index
    %c0_38 = arith.constant 0 : index
    %61 = vector.load %arg4[%c0_35, %c2_36, %c0_37, %c0_38] : memref<1x4x8x128xf32, #tpu.memory_space<vmem>>, vector<1x1x8x128xf32>
    %62 = vector.shape_cast %61 : vector<1x1x8x128xf32> to vector<8x128xf32>
    %63 = vector.shape_cast %60 : vector<8x128xf32> to vector<1x1x8x128xf32>
    tpu.vector_store %arg4[%c0_35, %c2_36, %c0_37, %c0_38], %63 {strides = array<i32>} : memref<1x4x8x128xf32, #tpu.memory_space<vmem>>, vector<1x1x8x128xf32>,
    %c0_39 = arith.constant 0 : index
    %c3 = arith.constant 3 : index
    %c0_40 = arith.constant 0 : index
    %c0_41 = arith.constant 0 : index
    %64 = vector.load %arg4[%c0_39, %c3, %c0_40, %c0_41] : memref<1x4x8x128xf32, #tpu.memory_space<vmem>>, vector<1x1x8x128xf32>
    %65 = vector.shape_cast %64 : vector<1x1x8x128xf32> to vector<8x128xf32>
    %66 = arith.addf %65, %45 : vector<8x128xf32>
    %c0_42 = arith.constant 0 : index
    %c3_43 = arith.constant 3 : index
    %c0_44 = arith.constant 0 : index
    %c0_45 = arith.constant 0 : index
    %67 = vector.load %arg4[%c0_42, %c3_43, %c0_44, %c0_45] : memref<1x4x8x128xf32, #tpu.memory_space<vmem>>, vector<1x1x8x128xf32>
    %68 = vector.shape_cast %67 : vector<1x1x8x128xf32> to vector<8x128xf32>
    %69 = vector.shape_cast %66 : vector<8x128xf32> to vector<1x1x8x128xf32>
    tpu.vector_store %arg4[%c0_42, %c3_43, %c0_44, %c0_45], %69 {strides = array<i32>} : memref<1x4x8x128xf32, #tpu.memory_space<vmem>>, vector<1x1x8x128xf32>,
    return
  }
  func.func @transform_0(%arg0: i32, %arg1: i32) -> (i32, i32) {
    %c1_i32 = arith.constant 1 : i32
    %0 = arith.muli %arg0, %c1_i32 : i32
    %1 = arith.addi %0, %arg1 : i32
    %c0_i32 = arith.constant 0 : i32
    %2 = arith.minsi %1, %c0_i32 : i32
    %c0_i32_0 = arith.constant 0 : i32
    %c0_i32_1 = arith.constant 0 : i32
    return %2, %c0_i32_0 : i32, i32
  }
  func.func @transform_1(%arg0: i32, %arg1: i32) -> (i32, i32) {
    %c1_i32 = arith.constant 1 : i32
    %0 = arith.muli %arg0, %c1_i32 : i32
    %1 = arith.addi %0, %arg1 : i32
    %c0_i32 = arith.constant 0 : i32
    %2 = arith.minsi %1, %c0_i32 : i32
    %c0_i32_0 = arith.constant 0 : i32
    %c0_i32_1 = arith.constant 0 : i32
    return %2, %c0_i32_0 : i32, i32
  }
  func.func @transform_2(%arg0: i32, %arg1: i32) -> (i32, i32, i32, i32) {
    %c0_i32 = arith.constant 0 : i32
    %c0_i32_0 = arith.constant 0 : i32
    %c0_i32_1 = arith.constant 0 : i32
    %c0_i32_2 = arith.constant 0 : i32
    return %arg0, %c0_i32, %c0_i32_0, %c0_i32_1 : i32, i32, i32, i32
  }
}

</mosaic_0001>

<llo_original>
// kernel: tpu_custom_call.1
$region0: #{tpu_custom_call.1}
  #allocation0 [shape = 'u32[]', space=smem, size = 0x4, offset = 0x4, fixed_abs, tag = 'smem constant byte address 0x4 - core index']
  #allocation1 [shape = 'u32[72,128]{1,0:T(1,128)}', space=vmem, size = 0x9000, scoped, tag = 'internal scratch']
  %s0 = inlined_call_operand.hbm [shape: f32[32,128], index: 0, kind: input, shape index: {}]
  %s1 = inlined_call_operand.hbm [shape: f32[32,128], index: 1, kind: input, shape index: {}]
  %s2 = inlined_call_operand.hbm [shape: f32[1,4,8,128], index: 2, kind: output, shape index: {}]
  %s3 = sld [smem:[#allocation0]]
  $region30: #{tpu_custom_call.1} parent=0
    _
  %s5 = ssub.s32 1, %s3
  %s6 = scalar_select 0, %s5, %s3
  $region1: #{tpu_custom_call.1} parent=0
    #allocation2 [shape = 'u8[16384]{0}', space=vmem, size = 0x4000, scoped, tag = 'input window, operand 0, single buffered']
    #allocation3 [shape = 's32[1]{0}', space=sflag, size = 0x4, scoped, tag = 'scoped memory for tpu_custom_call.1']
    #allocation4 [shape = 's32[1]{0}', space=sflag, size = 0x4, scoped, tag = 'scoped memory for tpu_custom_call.1']
    #allocation5 [shape = 'u8[16384]{0}', space=vmem, size = 0x4000, scoped, tag = 'input window, operand 1, single buffered']
    #allocation6 [shape = 's32[1]{0}', space=sflag, size = 0x4, scoped, tag = 'scoped memory for tpu_custom_call.1']
    #allocation7 [shape = 'u8[16384]{0}', space=vmem, size = 0x4000, scoped, tag = 'output window, operand 0, single buffered']
    %7 = vsyncpa [#allocation3], 0
    %8 = vsyncpa [#allocation6], 0
    %9 = vsyncpa [#allocation4], 0
    // Predicated region
    $region2: #{tpu_custom_call.1} parent=1 // pred_check
      _
    $region3: #{tpu_custom_call.1} parent=1 // pred_check_branch
      %11 = sbr.rel (0) target = $region5
    $region4: #{tpu_custom_call.1} parent=1 // pred_region
      %s12 = sadd.s32 0, 0
      %p13 = scmp.lt.s32.totalorder %s12, 0
      %s14 = scalar_select %p13, %s12, 0
      %s15 = smul.u32 4, %s14
      %17 = vsyncadd [#allocation3], 0
      %s18 = smul.addr %s15, 8
      %s19 = scalar_lea.hbm %s0, %s18
      %s20 = sshll.u32 %s19, 4
      %s21 = int_to_ptr.hbm [resolvable:$true] %s20
      %s22 = sshll.u32 [#allocation2], 4
      %s23 = int_to_ptr.vmem [resolvable:$true] %s22
      %28 = dma.hbm_to_vmem [thread:$0]  %s21, 512, %s23, [#allocation3], 128, 128, 8
    $region5: #{tpu_custom_call.1} parent=1 // pred_fallthru
      _
    // Predicated region
    $region6: #{tpu_custom_call.1} parent=1 // pred_check
      _
    $region7: #{tpu_custom_call.1} parent=1 // pred_check_branch
      %30 = sbr.rel (0) target = $region9
    $region8: #{tpu_custom_call.1} parent=1 // pred_region
      %s31 = sadd.s32 0, 0
      %p32 = scmp.lt.s32.totalorder %s31, 0
      %s33 = scalar_select %p32, %s31, 0
      %s34 = smul.u32 4, %s33
      %36 = vsyncadd [#allocation6], 0
      %s37 = smul.addr %s34, 8
      %s38 = scalar_lea.hbm %s1, %s37
      %s39 = sshll.u32 %s38, 4
      %s40 = int_to_ptr.hbm [resolvable:$true] %s39
      %s41 = sshll.u32 [#allocation5], 4
      %s42 = int_to_ptr.vmem [resolvable:$true] %s41
      %47 = dma.hbm_to_vmem [thread:$0]  %s40, 512, %s42, [#allocation6], 128, 128, 8
    $region9: #{tpu_custom_call.1} parent=1 // pred_fallthru
      _
    // Predicated region
    $region10: #{tpu_custom_call.1} parent=1 // pred_check
      _
    $region11: #{tpu_custom_call.1} parent=1 // pred_check_branch
      %49 = sbr.rel (0) target = $region13
    $region12: #{tpu_custom_call.1} parent=1 // pred_region
      %51 = dma.done [#allocation3], 512
    $region13: #{tpu_custom_call.1} parent=1 // pred_fallthru
      _
    // Predicated region
    $region14: #{tpu_custom_call.1} parent=1 // pred_check
      _
    $region15: #{tpu_custom_call.1} parent=1 // pred_check_branch
      %53 = sbr.rel (0) target = $region17
    $region16: #{tpu_custom_call.1} parent=1 // pred_region
      %55 = dma.done [#allocation6], 512
    $region17: #{tpu_custom_call.1} parent=1 // pred_fallthru
      _
    %s56 = sadd.s32 0, 0
    %p57 = scmp.lt.s32.totalorder %s56, 0
    %s58 = scalar_select %p57, %s56, 0
    %s59 = smul.u32 4, %s58
    %s60 = sadd.s32 0, 0
    %p61 = scmp.lt.s32.totalorder %s60, 0
    %s62 = scalar_select %p61, %s60, 0
    %s63 = smul.u32 4, %s62
    %p64 = scmp.eq.s32.totalorder 0, 0
    // Predicated region
    $region18: #{tpu_custom_call.1} parent=1 // pred_check
      %p65 = pneg %p64
    $region19: #{tpu_custom_call.1} parent=1 // pred_check_branch
      %67 = sbr.rel (%p65) target = $region21
    $region20: #{tpu_custom_call.1} parent=1 // pred_region
      %68 = vst [vmem:[#allocation7] sm:$0xff] 0.0
      %69 = vst [vmem:[#allocation7 + $0x8] sm:$0xff] 0.0
      %70 = vst [vmem:[#allocation7 + $0x10] sm:$0xff] 0.0
      %71 = vst [vmem:[#allocation7 + $0x18] sm:$0xff] 0.0
    $region21: #{tpu_custom_call.1} parent=1 // pred_fallthru
      _
    %v72 = vld [vmem:[#allocation2] sm:$0xff]
    %v73 = vld [vmem:[#allocation2 + $0x8] sm:$0xff]
    %v74 = vld [vmem:[#allocation2 + $0x10] sm:$0xff]
    %v75 = vld [vmem:[#allocation2 + $0x18] sm:$0xff]
    %v76 = vld [vmem:[#allocation5] sm:$0xff]
    %v77 = vld [vmem:[#allocation5 + $0x8] sm:$0xff]
    %v78 = vld [vmem:[#allocation5 + $0x10] sm:$0xff]
    %v79 = vld [vmem:[#allocation5 + $0x18] sm:$0xff]
    %vm80 = vcmp.eq.f32.partialorder %v76, 1.0
    %vm81 = vcmp.eq.f32.partialorder %v77, 1.0
    %vm82 = vcmp.eq.f32.partialorder %v78, 1.0
    %vm83 = vcmp.eq.f32.partialorder %v79, 1.0
    %vm84 = vcmp.eq.f32.partialorder %v76, 0.0
    %vm85 = vcmp.eq.f32.partialorder %v77, 0.0
    %vm86 = vcmp.eq.f32.partialorder %v78, 0.0
    %vm87 = vcmp.eq.f32.partialorder %v79, 0.0
    %v88 = vmax.f32 %v72, 0.0
    %v89 = vmax.f32 %v73, 0.0
    %v90 = vmax.f32 %v74, 0.0
    %v91 = vmax.f32 %v75, 0.0
    %v92 = vmul.f32 %v72, %v76
    %v93 = vmul.f32 %v73, %v77
    %v94 = vmul.f32 %v74, %v78
    %v95 = vmul.f32 %v75, %v79
    %v96 = vsub.f32 %v88, %v92
    %v97 = vsub.f32 %v89, %v93
    %v98 = vsub.f32 %v90, %v94
    %v99 = vsub.f32 %v91, %v95
    %v100 = vand.u32 2147483647, %v72
    %v101 = vand.u32 2147483647, %v73
    %v102 = vand.u32 2147483647, %v74
    %v103 = vand.u32 2147483647, %v75
    %v104 = vsub.f32 0.0, %v100
    %v105 = vsub.f32 0.0, %v101
    %v106 = vsub.f32 0.0, %v102
    %v107 = vsub.f32 0.0, %v103
    %v108 = vmul.f32 %v104, 1.442695
    %v109 = vpow.pop %v108
    %v110 = vmul.f32 %v105, 1.442695
    %v111 = vpow.pop %v110
    %v112 = vmul.f32 %v106, 1.442695
    %v113 = vpow.pop %v112
    %v114 = vmul.f32 %v107, 1.442695
    %v115 = vpow.pop %v114
    %v116 = vadd.f32 %v109, 1.0
    %v117 = vlog2.pop %v116
    %v118 = vmul.f32 %v117, 0.6931472
    %v119 = vmul.f32 -0.5, %v109
    %v120 = vadd.f32 %v119, 1.0
    %v121 = vmul.f32 %v120, %v109
    %v122 = vand.u32 2147483647, %v109
    %vm123 = vcmp.lt.f32.partialorder %v122, 0.0004427343
    %v124 = vsel %vm123, %v121, %v118
    %v125 = vadd.f32 %v111, 1.0
    %v126 = vlog2.pop %v125
    %v127 = vmul.f32 %v126, 0.6931472
    %v128 = vmul.f32 -0.5, %v111
    %v129 = vadd.f32 %v128, 1.0
    %v130 = vmul.f32 %v129, %v111
    %v131 = vand.u32 2147483647, %v111
    %vm132 = vcmp.lt.f32.partialorder %v131, 0.0004427343
    %v133 = vsel %vm132, %v130, %v127
    %v134 = vadd.f32 %v113, 1.0
    %v135 = vlog2.pop %v134
    %v136 = vmul.f32 %v135, 0.6931472
    %v137 = vmul.f32 -0.5, %v113
    %v138 = vadd.f32 %v137, 1.0
    %v139 = vmul.f32 %v138, %v113
    %v140 = vand.u32 2147483647, %v113
    %vm141 = vcmp.lt.f32.partialorder %v140, 0.0004427343
    %v142 = vsel %vm141, %v139, %v136
    %v143 = vadd.f32 %v115, 1.0
    %v144 = vlog2.pop %v143
    %v145 = vmul.f32 %v144, 0.6931472
    %v146 = vmul.f32 -0.5, %v115
    %v147 = vadd.f32 %v146, 1.0
    %v148 = vmul.f32 %v147, %v115
    %v149 = vand.u32 2147483647, %v115
    %vm150 = vcmp.lt.f32.partialorder %v149, 0.0004427343
    %v151 = vsel %vm150, %v148, %v145
    %v152 = vadd.f32 %v96, %v124
    %v153 = vadd.f32 %v97, %v133
    %v154 = vadd.f32 %v98, %v142
    %v155 = vadd.f32 %v99, %v151
    %v156 = vsel %vm80, 1.0, 0.0
    %v157 = vsel %vm81, 1.0, 0.0
    %v158 = vsel %vm82, 1.0, 0.0
    %v159 = vsel %vm83, 1.0, 0.0
    %v160 = vadd.f32 %v156, %v157
    %v161 = vadd.f32 %v160, %v158
    %v162 = vadd.f32 %v161, %v159
    %v163 = vadd.f32 %v162, 0.0
    %v164 = vsel %vm84, 1.0, 0.0
    %v165 = vsel %vm85, 1.0, 0.0
    %v166 = vsel %vm86, 1.0, 0.0
    %v167 = vsel %vm87, 1.0, 0.0
    %v168 = vadd.f32 %v164, %v165
    %v169 = vadd.f32 %v168, %v166
    %v170 = vadd.f32 %v169, %v167
    %v171 = vadd.f32 %v170, 0.0
    %v172 = vsel %vm80, %v152, 0.0
    %v173 = vsel %vm81, %v153, 0.0
    %v174 = vsel %vm82, %v154, 0.0
    %v175 = vsel %vm83, %v155, 0.0
    %v176 = vadd.f32 %v172, %v173
    %v177 = vadd.f32 %v176, %v174
    %v178 = vadd.f32 %v177, %v175
    %v179 = vadd.f32 %v178, 0.0
    %v180 = vsel %vm84, %v152, 0.0
    %v181 = vsel %vm85, %v153, 0.0
    %v182 = vsel %vm86, %v154, 0.0
    %v183 = vsel %vm87, %v155, 0.0
    %v184 = vadd.f32 %v180, %v181
    %v185 = vadd.f32 %v184, %v182
    %v186 = vadd.f32 %v185, %v183
    %v187 = vadd.f32 %v186, 0.0
    %v188 = vld [vmem:[#allocation7] sm:$0xff]
    %v189 = vadd.f32 %v188, %v163
    %190 = vst [vmem:[#allocation7] sm:$0xff] %v189
    %s191 = scalar_lea.vmem [#allocation7], 8
    %v192 = vld [vmem:[%s191] sm:$0xff]
    %v193 = vadd.f32 %v192, %v171
    %194 = vst [vmem:[%s191] sm:$0xff] %v193
    %s195 = scalar_lea.vmem [#allocation7], 16
    %v196 = vld [vmem:[%s195] sm:$0xff]
    %v197 = vadd.f32 %v196, %v179
    %198 = vst [vmem:[%s195] sm:$0xff] %v197
    %s199 = scalar_lea.vmem [#allocation7], 24
    %v200 = vld [vmem:[%s199] sm:$0xff]
    %v201 = vadd.f32 %v200, %v187
    %202 = vst [vmem:[%s199] sm:$0xff] %v201
    // Predicated region
    $region22: #{tpu_custom_call.1} parent=1 // pred_check
      _
    $region23: #{tpu_custom_call.1} parent=1 // pred_check_branch
      %204 = sbr.rel (0) target = $region25
    $region24: #{tpu_custom_call.1} parent=1 // pred_region
      %206 = vsyncadd [#allocation4], 0
      %s207 = sshll.u32 [#allocation7], 4
      %s208 = int_to_ptr.vmem [resolvable:$true] %s207
      %s209 = sshll.u32 %s2, 4
      %s210 = int_to_ptr.hbm [resolvable:$true] %s209
      %215 = dma.vmem_to_hbm [thread:$0]  %s208, 512, %s210, [#allocation4], 128, 128, 8
    $region25: #{tpu_custom_call.1} parent=1 // pred_fallthru
      _
    // Predicated region
    $region26: #{tpu_custom_call.1} parent=1 // pred_check
      _
    $region27: #{tpu_custom_call.1} parent=1 // pred_check_branch
      %217 = sbr.rel (0) target = $region29
    $region28: #{tpu_custom_call.1} parent=1 // pred_region
      %219 = dma.done [#allocation4], 512
    $region29: #{tpu_custom_call.1} parent=1 // pred_fallthru
      _
    %220 = vsyncpa [#allocation3], 1
    %221 = vsyncpa [#allocation6], 1
    %222 = vsyncpa [#allocation4], 1

</llo_original>
